<compile_context>
chip_gen: v7x
topology: tpu7x:2x2x1
jax: 0.10.0
libtpu: 0.0.40
codegen_flags: <defaults>
</compile_context>

<pallas_src>
import jax
import jax.numpy as jnp
from jax.experimental import pallas as pl
from jax.experimental.pallas import tpu as pltpu

NEG_SLOPE = 0.01  # PyTorch nn.LeakyReLU default


def _leaky_relu(x):
    return jnp.where(x >= 0, x, NEG_SLOPE * x)


# ------------------------------------------------------------------ kernel --
def fused_attention_kernel(e_ref, dst_ref, len_ref,
                           w_src_ref, w_dst_ref, w1_ref, w2_ref,
                           b_fold_ref, b1_ref, b2_ref, out_ref):
    """One destination-node tile: fused dst_linear + per-edge MLP + softmax.

    e_ref   : [TN*MD, D] bf16   padded edge features (MD slots per node)
    dst_ref : [TN, D]    bf16   destination-node features
    len_ref : [TN, 1]    int32  valid edges per node
    out_ref : [TN, MD]   f32    softmaxed attention per edge slot (lane-dense)
    """
    TN, MD = out_ref.shape
    D = dst_ref.shape[1]

    # dst_linear computed once per node, in-tile (fused; MXU has huge slack):
    #   r_fb = dst_feat @ W_dst + (b_src + b_dst)
    r_fb = jnp.dot(dst_ref[...], w_dst_ref[...],
                   preferred_element_type=jnp.float32) + b_fold_ref[...]     # [TN, D]

    # src_linear on all padded edge slots of the tile (MXU, bf16 in / f32 acc).
    e_ft = jnp.dot(e_ref[...], w_src_ref[...],
                   preferred_element_type=jnp.float32)                       # [TN*MD, D]

    # fn.e_add_v: every edge slot of node n sees r_ft[n] (+ folded biases).
    score = e_ft.reshape(TN, MD, D) + r_fb.reshape(TN, 1, D)                 # [TN, MD, D]

    # final_mlp: LeakyReLU -> Linear(D,D) -> LeakyReLU -> Linear(D,1)
    h = _leaky_relu(score).reshape(TN * MD, D)
    h = jnp.dot(h.astype(jnp.bfloat16), w1_ref[...],
                preferred_element_type=jnp.float32) + b1_ref[...]            # [TN*MD, D]
    h = _leaky_relu(h).reshape(TN, MD, D)
    # Linear(D, 1) as VPU multiply + lane reduce; result is lane-dense [TN, MD].
    s = jnp.sum(h * w2_ref[...], axis=-1) + b2_ref[...]                      # [TN, MD]

    # edge_softmax over each destination's padded segment (MD on the lane axis).
    pos = jax.lax.broadcasted_iota(jnp.int32, (TN, MD), 1)
    valid = pos < len_ref[...]                                               # [TN, MD]
    s_msk = jnp.where(valid, s, jnp.float32(-1e30))
    seg_max = jnp.max(s_msk, axis=1, keepdims=True)                          # [TN, 1]
    p = jnp.where(valid, jnp.exp(s_msk - seg_max), jnp.float32(0.0))
    denom = jnp.sum(p, axis=1, keepdims=True)                                # [TN, 1]
    denom = jnp.where(denom > 0, denom, jnp.float32(1.0))                    # empty rows
    out_ref[...] = p * pl.reciprocal(denom, approx=True)


# ----------------------------------------------------------------- wrapper --
def attention_with_epinions(src_feat, dst_feat, dst_idx, params,
                            *, nodes_per_tile=None, max_degree=None,
                            vmem_budget_bytes=40 * 1024 * 1024):
    """src_feat: [E, D], dst_feat: [N, D], dst_idx: [E] int32 -> [E, 1] f32."""
    E, D = src_feat.shape
    N = dst_feat.shape[0]
    w_src, b_src, w_dst, b_dst, w1, b1, w2, b2 = params

    # ---- wrapper-side bucketing: sort edges by dst, pad to ELL layout ------
    order = jnp.argsort(dst_idx)                       # edges grouped by dst
    dst_sorted = dst_idx[order]
    deg = jnp.zeros((N,), jnp.int32).at[dst_idx].add(1)
    starts = jnp.cumsum(deg) - deg                     # CSR row offsets
    pos = jnp.arange(E, dtype=jnp.int32) - starts[dst_sorted]

    if max_degree is None:
        # TODO(synk): host sync + data-dependent shapes -> recompiles; pass a
        #             static max_degree in a jitted deployment.
        max_degree = int(jnp.max(deg))
    MD = max(8, -(-max_degree // 8) * 8)               # sublane-aligned degree

    # ---- tile sizing: biggest TN (multiple of 8) whose working set fits the
    # VMEM budget (double-buffered DMA blocks + f32 in-kernel temporaries),
    # kept <= 2048 and capped so the grid keeps >= 2 steps (v7x: 2 TCs).
    if nodes_per_tile is None:
        per_node_bytes = (2 * (MD * D * 2 + D * 2 + MD * 4 + 4)   # dbl-buffered blocks
                          + 3 * MD * D * 4)                       # e_ft/score/h (f32)
        tn = (vmem_budget_bytes // max(per_node_bytes, 1)) // 8 * 8
        tn = max(8, min(tn, 2048))
        half = max(8, (-(-N // 2) + 7) // 8 * 8)        # ceil(N/2), 8-aligned
        nodes_per_tile = min(tn, half)                  # keep >= 2 grid steps
    TN = nodes_per_tile
    assert TN % 8 == 0
    N_pad = -(-N // TN) * TN

    # ---- padded (ELL) edge tensor + per-node degrees, bf16 MXU operands ----
    src_bf = src_feat.astype(jnp.bfloat16)
    e_pad = (jnp.zeros((N_pad, MD, D), jnp.bfloat16)
             .at[dst_sorted, pos, :].set(src_bf[order]))
    e_flat = e_pad.reshape(N_pad * MD, D)
    dst_bf = jnp.zeros((N_pad, D), jnp.bfloat16).at[:N, :].set(
        dst_feat.astype(jnp.bfloat16))
    lens2 = jnp.zeros((N_pad, 1), jnp.int32).at[:N, 0].set(deg)

    w_src_bf = w_src.astype(jnp.bfloat16)
    w_dst_bf = w_dst.astype(jnp.bfloat16)
    w1_bf = w1.astype(jnp.bfloat16)
    b_fold = (b_src + b_dst).astype(jnp.float32)        # folded biases, [1, D]
    w2_row = w2.reshape(1, D).astype(jnp.float32)
    b1_f = b1.astype(jnp.float32)
    b2_f = b2.astype(jnp.float32)

    grid = (N_pad // TN,)
    cparams = pltpu.CompilerParams(
        dimension_semantics=("parallel",),               # v7x: 2 TensorCores
        vmem_limit_bytes=48 * 1024 * 1024)               # v7x-safe (64 MiB phys)

    cost = pl.CostEstimate(
        flops=int(N_pad * MD * (4 * D * D + 2 * D) + N_pad * 2 * D * D),
        transcendentals=int(N_pad * MD + N_pad),
        bytes_accessed=int(N_pad * MD * D * 2 + N_pad * D * 2 + N_pad * 4
                           + N_pad * MD * 4 + 3 * D * D * 2 + 4 * D * 4 + 4))

    out_pad = pl.pallas_call(
        fused_attention_kernel,
        out_shape=jax.ShapeDtypeStruct((N_pad, MD), jnp.float32),
        grid=grid,
        in_specs=[
            pl.BlockSpec((TN * MD, D), lambda i: (i, 0)),    # padded edge feats
            pl.BlockSpec((TN, D), lambda i: (i, 0)),         # dst node feats
            pl.BlockSpec((TN, 1), lambda i: (i, 0)),         # valid degree
            pl.BlockSpec((D, D), lambda i: (0, 0)),          # w_src
            pl.BlockSpec((D, D), lambda i: (0, 0)),          # w_dst
            pl.BlockSpec((D, D), lambda i: (0, 0)),          # w1
            pl.BlockSpec((1, D), lambda i: (0, 0)),          # w2 (row layout)
            pl.BlockSpec((1, D), lambda i: (0, 0)),          # b_src + b_dst
            pl.BlockSpec((1, D), lambda i: (0, 0)),          # b1
            pl.BlockSpec((1, 1), lambda i: (0, 0)),          # b2
        ],
        out_specs=pl.BlockSpec((TN, MD), lambda i: (i, 0)),  # lane-dense output
        compiler_params=cparams,
        cost_estimate=cost,
    )(e_flat, dst_bf, lens2, w_src_bf, w_dst_bf, w1_bf, w2_row,
      b_fold, b1_f, b2_f)

    # ---- un-pad and restore original edge order ----------------------------
    p_sorted = out_pad[dst_sorted, pos]                                # [E]
    return jnp.zeros((E,), jnp.float32).at[order].set(p_sorted).reshape(E, 1)


# --------------------------------------------------------------- reference --
def reference(src_feat, dst_feat, dst_idx, params):
    """Pure-f32 reference implementing the PyTorch module semantics."""
    w_src, b_src, w_dst, b_dst, w1, b1, w2, b2 = params
    e_ft = src_feat @ w_src + b_src
    r_ft = dst_feat @ w_dst + b_dst
    score = e_ft + r_ft[dst_idx]
    h = jnp.where(score >= 0, score, NEG_SLOPE * score)
    h = h @ w1 + b1
    h = jnp.where(h >= 0, h, NEG_SLOPE * h)
    s = (h @ w2 + b2)[:, 0]
    N = dst_feat.shape[0]
    seg_max = jax.ops.segment_max(s, dst_idx, num_segments=N)
    p = jnp.exp(s - seg_max[dst_idx])
    seg_sum = jax.ops.segment_sum(p, dst_idx, num_segments=N)
    return (p / seg_sum[dst_idx]).reshape(-1, 1)


if __name__ == "__main__":
    key = jax.random.PRNGKey(0)
    E, N, D = 128, 16, 32   # edges, dst nodes, embedding_size

    ks = jax.random.split(key, 12)
    src_feat = jax.random.normal(ks[0], (E, D), jnp.float32)
    dst_feat = jax.random.normal(ks[1], (N, D), jnp.float32)
    dst_idx = jax.random.randint(ks[2], (E,), 0, N, jnp.int32)

    scale = 0.1
    params = (
        scale * jax.random.normal(ks[3], (D, D), jnp.float32),   # w_src ([in,out])
        scale * jax.random.normal(ks[4], (1, D), jnp.float32),   # b_src
        scale * jax.random.normal(ks[5], (D, D), jnp.float32),   # w_dst
        scale * jax.random.normal(ks[6], (1, D), jnp.float32),   # b_dst
        scale * jax.random.normal(ks[7], (D, D), jnp.float32),   # w1
        scale * jax.random.normal(ks[8], (1, D), jnp.float32),   # b1
        scale * jax.random.normal(ks[9], (D, 1), jnp.float32),   # w2
        scale * jax.random.normal(ks[10], (1, 1), jnp.float32),  # b2
    )

    out = attention_with_epinions(src_feat, dst_feat, dst_idx, params)
    out = jax.block_until_ready(out)

    ref = reference(src_feat, dst_feat, dst_idx, params)
    assert out.shape == (E, 1)
    max_diff = float(jnp.max(jnp.abs(out - ref)))
    # bf16 MXU operands + approximate reciprocal -> loose tolerance vs f32 ref
    assert jnp.allclose(out, ref, rtol=5e-2, atol=5e-3), (
        f"max abs diff {max_diff}")

    # per-destination softmax must sum to 1 over nodes that have edges
    sums = jax.ops.segment_sum(out[:, 0], dst_idx, num_segments=N)
    deg = jnp.zeros((N,), jnp.int32).at[dst_idx].add(1)
    assert jnp.allclose(jnp.where(deg > 0, sums, 1.0), 1.0, atol=5e-3)

    print("KERNEL_OK")
</pallas_src>

<mosaic_0001>
module attributes {stable_mosaic.version = 11 : i64} {
  func.func @fused_attention_kernel(%arg0: i32, %arg1: memref<128x32xbf16, #tpu.memory_space<vmem>>, %arg2: memref<8x32xbf16, #tpu.memory_space<vmem>>, %arg3: memref<8x1xi32, #tpu.memory_space<vmem>>, %arg4: memref<32x32xbf16, #tpu.memory_space<vmem>>, %arg5: memref<32x32xbf16, #tpu.memory_space<vmem>>, %arg6: memref<32x32xbf16, #tpu.memory_space<vmem>>, %arg7: memref<1x32xf32, #tpu.memory_space<vmem>>, %arg8: memref<1x32xf32, #tpu.memory_space<vmem>>, %arg9: memref<1x32xf32, #tpu.memory_space<vmem>>, %arg10: memref<1x1xf32, #tpu.memory_space<vmem>>, %arg11: memref<8x16xf32, #tpu.memory_space<vmem>>) attributes {dimension_semantics = [#tpu.dimension_semantics<parallel>], iteration_bounds = array<i64: 2>, scalar_prefetch = 0 : i64, scratch_operands = 0 : i64, tpu.core_type = #tpu.core_type<tc>, window_params = [{transform_indices = @transform_0, window_bounds = array<i64: 128, 32>}, {transform_indices = @transform_1, window_bounds = array<i64: 8, 32>}, {transform_indices = @transform_2, window_bounds = array<i64: 8, 1>}, {pipeline_mode = #tpu.pipeline_mode<synchronous>, transform_indices = @transform_3, window_bounds = array<i64: 32, 32>}, {pipeline_mode = #tpu.pipeline_mode<synchronous>, transform_indices = @transform_4, window_bounds = array<i64: 32, 32>}, {pipeline_mode = #tpu.pipeline_mode<synchronous>, transform_indices = @transform_5, window_bounds = array<i64: 32, 32>}, {pipeline_mode = #tpu.pipeline_mode<synchronous>, transform_indices = @transform_6, window_bounds = array<i64: 1, 32>}, {pipeline_mode = #tpu.pipeline_mode<synchronous>, transform_indices = @transform_7, window_bounds = array<i64: 1, 32>}, {pipeline_mode = #tpu.pipeline_mode<synchronous>, transform_indices = @transform_8, window_bounds = array<i64: 1, 32>}, {pipeline_mode = #tpu.pipeline_mode<synchronous>, transform_indices = @transform_9, window_bounds = array<i64: 1, 1>}, {transform_indices = @transform_10, window_bounds = array<i64: 8, 16>}]} {
    %c0 = arith.constant 0 : index
    %c0_0 = arith.constant 0 : index
    %0 = vector.load %arg2[%c0, %c0_0] : memref<8x32xbf16, #tpu.memory_space<vmem>>, vector<8x32xbf16>
    %c0_1 = arith.constant 0 : index
    %c0_2 = arith.constant 0 : index
    %1 = vector.load %arg5[%c0_1, %c0_2] : memref<32x32xbf16, #tpu.memory_space<vmem>>, vector<32x32xbf16>
    %cst = arith.constant dense<0.000000e+00> : vector<8x32xf32>
    %2 = tpu.matmul %0, %1, %cst {dimension_numbers = #tpu.dot_dimension_numbers<[1], [0], [0], [1], [0, 0, 1, 1], [], []>} : vector<8x32xbf16>, vector<32x32xbf16>, vector<8x32xf32> -> vector<8x32xf32>
    %c0_3 = arith.constant 0 : index
    %c0_4 = arith.constant 0 : index
    %3 = vector.load %arg8[%c0_3, %c0_4] : memref<1x32xf32, #tpu.memory_space<vmem>>, vector<1x32xf32>
    %4 = vector.broadcast %3 : vector<1x32xf32> to vector<8x32xf32>
    %5 = arith.addf %2, %4 : vector<8x32xf32>
    %c0_5 = arith.constant 0 : index
    %c0_6 = arith.constant 0 : index
    %6 = vector.load %arg1[%c0_5, %c0_6] : memref<128x32xbf16, #tpu.memory_space<vmem>>, vector<128x32xbf16>
    %c0_7 = arith.constant 0 : index
    %c0_8 = arith.constant 0 : index
    %7 = vector.load %arg4[%c0_7, %c0_8] : memref<32x32xbf16, #tpu.memory_space<vmem>>, vector<32x32xbf16>
    %cst_9 = arith.constant dense<0.000000e+00> : vector<128x32xf32>
    %8 = tpu.matmul %6, %7, %cst_9 {dimension_numbers = #tpu.dot_dimension_numbers<[1], [0], [0], [1], [0, 0, 1, 1], [], []>} : vector<128x32xbf16>, vector<32x32xbf16>, vector<128x32xf32> -> vector<128x32xf32>
    %9 = vector.shape_cast %8 : vector<128x32xf32> to vector<8x16x32xf32>
    %10 = vector.shape_cast %5 : vector<8x32xf32> to vector<8x1x32xf32>
    %11 = vector.broadcast %10 : vector<8x1x32xf32> to vector<8x16x32xf32>
    %12 = arith.addf %9, %11 : vector<8x16x32xf32>
    %cst_10 = arith.constant 0.000000e+00 : f32
    %13 = vector.broadcast %cst_10 : f32 to vector<8x16x32xf32>
    %14 = arith.cmpf oge, %12, %13 : vector<8x16x32xf32>
    %cst_11 = arith.constant 0.00999999977 : f32
    %15 = vector.broadcast %cst_11 : f32 to vector<8x16x32xf32>
    %16 = arith.mulf %15, %12 : vector<8x16x32xf32>
    %17 = arith.select %14, %12, %16 : vector<8x16x32xi1>, vector<8x16x32xf32>
    %18 = vector.shape_cast %17 : vector<8x16x32xf32> to vector<128x32xf32>
    %19 = arith.truncf %18 : vector<128x32xf32> to vector<128x32xbf16>
    %c0_12 = arith.constant 0 : index
    %c0_13 = arith.constant 0 : index
    %20 = vector.load %arg6[%c0_12, %c0_13] : memref<32x32xbf16, #tpu.memory_space<vmem>>, vector<32x32xbf16>
    %cst_14 = arith.constant dense<0.000000e+00> : vector<128x32xf32>
    %21 = tpu.matmul %19, %20, %cst_14 {dimension_numbers = #tpu.dot_dimension_numbers<[1], [0], [0], [1], [0, 0, 1, 1], [], []>} : vector<128x32xbf16>, vector<32x32xbf16>, vector<128x32xf32> -> vector<128x32xf32>
    %c0_15 = arith.constant 0 : index
    %c0_16 = arith.constant 0 : index
    %22 = vector.load %arg9[%c0_15, %c0_16] : memref<1x32xf32, #tpu.memory_space<vmem>>, vector<1x32xf32>
    %23 = vector.broadcast %22 : vector<1x32xf32> to vector<128x32xf32>
    %24 = arith.addf %21, %23 : vector<128x32xf32>
    %cst_17 = arith.constant 0.000000e+00 : f32
    %25 = vector.broadcast %cst_17 : f32 to vector<128x32xf32>
    %26 = arith.cmpf oge, %24, %25 : vector<128x32xf32>
    %cst_18 = arith.constant 0.00999999977 : f32
    %27 = vector.broadcast %cst_18 : f32 to vector<128x32xf32>
    %28 = arith.mulf %27, %24 : vector<128x32xf32>
    %29 = arith.select %26, %24, %28 : vector<128x32xi1>, vector<128x32xf32>
    %30 = vector.shape_cast %29 : vector<128x32xf32> to vector<8x16x32xf32>
    %c0_19 = arith.constant 0 : index
    %c0_20 = arith.constant 0 : index
    %31 = vector.load %arg7[%c0_19, %c0_20] : memref<1x32xf32, #tpu.memory_space<vmem>>, vector<1x32xf32>
    %32 = vector.shape_cast %31 : vector<1x32xf32> to vector<1x1x32xf32>
    %33 = vector.broadcast %32 : vector<1x1x32xf32> to vector<8x16x32xf32>
    %34 = arith.mulf %30, %33 : vector<8x16x32xf32>
    %cst_21 = arith.constant dense<0.000000e+00> : vector<8x16xf32>
    %35 = vector.multi_reduction <add>, %34, %cst_21 [2] : vector<8x16x32xf32> to vector<8x16xf32>
    %c0_22 = arith.constant 0 : index
    %c0_23 = arith.constant 0 : index
    %36 = vector.load %arg10[%c0_22, %c0_23] : memref<1x1xf32, #tpu.memory_space<vmem>>, vector<1x1xf32>
    %37 = vector.broadcast %36 : vector<1x1xf32> to vector<8x16xf32>
    %38 = arith.addf %35, %37 : vector<8x16xf32>
    %39 = tpu.iota {dimensions = array<i32: 1>} : vector<8x16xi32>
    %c0_24 = arith.constant 0 : index
    %c0_25 = arith.constant 0 : index
    %40 = vector.load %arg3[%c0_24, %c0_25] : memref<8x1xi32, #tpu.memory_space<vmem>>, vector<8x1xi32>
    %41 = vector.broadcast %40 : vector<8x1xi32> to vector<8x16xi32>
    %42 = arith.cmpi slt, %39, %41 : vector<8x16xi32>
    %cst_26 = arith.constant -1.000000e+30 : f32
    %43 = vector.broadcast %cst_26 : f32 to vector<8x16xf32>
    %44 = arith.select %42, %38, %43 : vector<8x16xi1>, vector<8x16xf32>
    %cst_27 = arith.constant dense<0xFF800000> : vector<8xf32>
    %45 = vector.multi_reduction <maximumf>, %44, %cst_27 [1] : vector<8x16xf32> to vector<8xf32>
    %46 = vector.shape_cast %45 : vector<8xf32> to vector<8x1xf32>
    %47 = vector.broadcast %46 : vector<8x1xf32> to vector<8x16xf32>
    %48 = arith.subf %44, %47 : vector<8x16xf32>
    %49 = math.exp %48 : vector<8x16xf32>
    %cst_28 = arith.constant 0.000000e+00 : f32
    %50 = vector.broadcast %cst_28 : f32 to vector<8x16xf32>
    %51 = arith.select %42, %49, %50 : vector<8x16xi1>, vector<8x16xf32>
    %cst_29 = arith.constant dense<0.000000e+00> : vector<8xf32>
    %52 = vector.multi_reduction <add>, %51, %cst_29 [1] : vector<8x16xf32> to vector<8xf32>
    %53 = vector.shape_cast %52 : vector<8xf32> to vector<8x1xf32>
    %cst_30 = arith.constant 0.000000e+00 : f32
    %54 = vector.broadcast %cst_30 : f32 to vector<8x1xf32>
    %55 = arith.cmpf ogt, %53, %54 : vector<8x1xf32>
    %cst_31 = arith.constant 1.000000e+00 : f32
    %56 = vector.broadcast %cst_31 : f32 to vector<8x1xf32>
    %57 = arith.select %55, %53, %56 : vector<8x1xi1>, vector<8x1xf32>
    %58 = tpu.reciprocal %57 {approx = true} : vector<8x1xf32> -> vector<8x1xf32>
    %59 = vector.broadcast %58 : vector<8x1xf32> to vector<8x16xf32>
    %60 = arith.mulf %51, %59 : vector<8x16xf32>
    %c0_32 = arith.constant 0 : index
    %c0_33 = arith.constant 0 : index
    %61 = vector.load %arg11[%c0_32, %c0_33] : memref<8x16xf32, #tpu.memory_space<vmem>>, vector<8x16xf32>
    tpu.vector_store %arg11[%c0_32, %c0_33], %60 {strides = array<i32>} : memref<8x16xf32, #tpu.memory_space<vmem>>, vector<8x16xf32>,
    return
  }
  func.func @transform_0(%arg0: i32) -> (i32, i32) {
    %c0_i32 = arith.constant 0 : i32
    %c0_i32_0 = arith.constant 0 : i32
    return %arg0, %c0_i32 : i32, i32
  }
  func.func @transform_1(%arg0: i32) -> (i32, i32) {
    %c0_i32 = arith.constant 0 : i32
    %c0_i32_0 = arith.constant 0 : i32
    return %arg0, %c0_i32 : i32, i32
  }
  func.func @transform_2(%arg0: i32) -> (i32, i32) {
    %c0_i32 = arith.constant 0 : i32
    %c0_i32_0 = arith.constant 0 : i32
    return %arg0, %c0_i32 : i32, i32
  }
  func.func @transform_3(%arg0: i32) -> (i32, i32) {
    %c0_i32 = arith.constant 0 : i32
    %c0_i32_0 = arith.constant 0 : i32
    %c0_i32_1 = arith.constant 0 : i32
    return %c0_i32, %c0_i32_0 : i32, i32
  }
  func.func @transform_4(%arg0: i32) -> (i32, i32) {
    %c0_i32 = arith.constant 0 : i32
    %c0_i32_0 = arith.constant 0 : i32
    %c0_i32_1 = arith.constant 0 : i32
    return %c0_i32, %c0_i32_0 : i32, i32
  }
  func.func @transform_5(%arg0: i32) -> (i32, i32) {
    %c0_i32 = arith.constant 0 : i32
    %c0_i32_0 = arith.constant 0 : i32
    %c0_i32_1 = arith.constant 0 : i32
    return %c0_i32, %c0_i32_0 : i32, i32
  }
  func.func @transform_6(%arg0: i32) -> (i32, i32) {
    %c0_i32 = arith.constant 0 : i32
    %c0_i32_0 = arith.constant 0 : i32
    %c0_i32_1 = arith.constant 0 : i32
    return %c0_i32, %c0_i32_0 : i32, i32
  }
  func.func @transform_7(%arg0: i32) -> (i32, i32) {
    %c0_i32 = arith.constant 0 : i32
    %c0_i32_0 = arith.constant 0 : i32
    %c0_i32_1 = arith.constant 0 : i32
    return %c0_i32, %c0_i32_0 : i32, i32
  }
  func.func @transform_8(%arg0: i32) -> (i32, i32) {
    %c0_i32 = arith.constant 0 : i32
    %c0_i32_0 = arith.constant 0 : i32
    %c0_i32_1 = arith.constant 0 : i32
    return %c0_i32, %c0_i32_0 : i32, i32
  }
  func.func @transform_9(%arg0: i32) -> (i32, i32) {
    %c0_i32 = arith.constant 0 : i32
    %c0_i32_0 = arith.constant 0 : i32
    %c0_i32_1 = arith.constant 0 : i32
    return %c0_i32, %c0_i32_0 : i32, i32
  }
  func.func @transform_10(%arg0: i32) -> (i32, i32) {
    %c0_i32 = arith.constant 0 : i32
    %c0_i32_0 = arith.constant 0 : i32
    return %arg0, %c0_i32 : i32, i32
  }
}

</mosaic_0001>

<llo_original>
// kernel: tpu_custom_call.1
$region0: #{tpu_custom_call.1}
  #allocation0 [shape = 'u32[]', space=smem, size = 0x4, offset = 0x4, fixed_abs, tag = 'smem constant byte address 0x4 - core index']
  #allocation1 [shape = 'u32[144,128]{1,0:T(1,128)}', space=vmem, size = 0x12000, scoped, tag = 'internal scratch']
  #allocation2 [shape = 'f32[1,1]{1,0:T(1,128)S(1)}', space=vmem, size = 0x200, scoped, tag = 'scoped memory for tpu_custom_call.1']
  %s0 = inlined_call_operand.vmem [shape: bf16[256,32], index: 0, kind: input, shape index: {}]
  %s1 = inlined_call_operand.vmem [shape: bf16[16,32], index: 1, kind: input, shape index: {}]
  %s2 = inlined_call_operand.vmem [shape: s32[16,1], index: 2, kind: input, shape index: {}]
  %s3 = inlined_call_operand.vmem [shape: bf16[32,32], index: 3, kind: input, shape index: {}]
  %s4 = inlined_call_operand.vmem [shape: bf16[32,32], index: 4, kind: input, shape index: {}]
  %s5 = inlined_call_operand.vmem [shape: bf16[32,32], index: 5, kind: input, shape index: {}]
  %s6 = inlined_call_operand.vmem [shape: f32[1,32], index: 6, kind: input, shape index: {}]
  %s7 = inlined_call_operand.vmem [shape: f32[1,32], index: 7, kind: input, shape index: {}]
  %s8 = inlined_call_operand.vmem [shape: f32[1,32], index: 8, kind: input, shape index: {}]
  %s9 = inlined_call_operand.<no memory space> [shape: f32[1,1], index: 9, kind: input, shape index: {}]
  %s10 = inlined_call_operand.hbm [shape: f32[16,16], index: 10, kind: output, shape index: {}]
  %s11 = sld [smem:[#allocation0]]
  $region73: #{tpu_custom_call.1} parent=0
    _
  %s13 = ssub.s32 1, %s11
  %s14 = scalar_select 0, %s13, %s11
  %v15 = vstv %s9
  %16 = vst [vmem:[#allocation2] sm:$0x1] %v15
  $region1: #{tpu_custom_call.1} parent=0
    #allocation3 [shape = 'u8[8192]{0}', space=vmem, size = 0x2000, scoped, tag = 'output window, operand 0']
    #allocation4 [shape = 's32[2]{0}', space=sflag, size = 0x8, scoped, tag = 'scoped memory for tpu_custom_call.1']
    %17 = vsyncpa [#allocation4], 0
    %s18 = scalar_lea.sflag [#allocation4], 1
    %19 = vsyncpa %s18, 0
    loop: start=0, step=1, limit=4
    $region2: #{tpu_custom_call.1} parent=1 // loop_pre_header
      _
    $region3: #{tpu_custom_call.1} parent=1 // loop_header
      %s21 = sphi 0, %s25
      %p22 = scmp.ge.s32.totalorder %s21, 4
      %s31 = sphi 0, %s33
      %s34 = sphi 0, %s31
      %s35 = sphi 0, %s34
      %s51 = sphi 0, %s35
      %s57 = sphi 0, %s59
      %s60 = sphi 0, %s57
      %s61 = sphi 0, %s60
      %s77 = sphi 0, %s61
      %s83 = sphi 0, %s85
      %s86 = sphi 0, %s83
      %s87 = sphi 0, %s86
      %s103 = sphi 0, %s87
      %s107 = sphi 0, %s107
      %s109 = sphi 0, %s107
      %s110 = sphi 0, %s109
      %s124 = sphi 0, %s110
      %s128 = sphi 0, %s128
      %s130 = sphi 0, %s128
      %s131 = sphi 0, %s130
      %s145 = sphi 0, %s131
      %s149 = sphi 0, %s149
      %s151 = sphi 0, %s149
      %s152 = sphi 0, %s151
      %s166 = sphi 0, %s152
      %s170 = sphi 0, %s170
      %s172 = sphi 0, %s170
      %s173 = sphi 0, %s172
      %s187 = sphi 0, %s173
      %s191 = sphi 0, %s191
      %s193 = sphi 0, %s191
      %s194 = sphi 0, %s193
      %s208 = sphi 0, %s194
      %s212 = sphi 0, %s212
      %s214 = sphi 0, %s212
      %s215 = sphi 0, %s214
      %s229 = sphi 0, %s215
      %s233 = sphi 0, %s233
      %s235 = sphi 0, %s233
      %s236 = sphi 0, %s235
      %s250 = sphi 0, %s236
      %s256 = sphi 0, %s258
      %s259 = sphi 0, %s256
      %s260 = sphi 0, %s259
      %s276 = sphi 0, %s260
    $region4: #{tpu_custom_call.1} parent=1 // loop_header_branch
      %24 = sbr.rel (%p22) target = $region8
    $region5: #{tpu_custom_call.1} parent=1 // loop_body
      %s26 = ssub.s32 %s21, 1
      %s27 = ssub.s32 %s21, 2
      %s28 = sadd.s32 %s21, 1
      %s29 = ssub.s32 %s21, %s28
      %p30 = scmp.eq.s32.totalorder %s29, 0
      %s32 = sadd.s32 %s31, 1
      %s33 = scalar_select %p30, %s31, %s32
      %p36 = pneg %p30
      %p37 = scmp.eq.s32.totalorder %s21, 1
      %p38 = por %p36, %p37
      %p39 = scmp.ne.s32.totalorder %s31, %s34
      %p40 = scmp.eq.s32.totalorder %s21, 0
      %p41 = por %p39, %p40
      %p42 = scmp.ne.s32.totalorder %s31, %s34
      %p43 = scmp.eq.s32.totalorder %s26, 1
      %p44 = por %p42, %p43
      %p45 = scmp.ne.s32.totalorder %s34, %s35
      %p46 = scmp.eq.s32.totalorder %s26, 0
      %p47 = por %p45, %p46
      %p48 = scmp.ne.s32.totalorder %s34, %s35
      %p49 = scmp.eq.s32.totalorder %s27, 1
      %p50 = por %p48, %p49
      %p52 = scmp.ne.s32.totalorder %s35, %s51
      %p53 = scmp.eq.s32.totalorder %s27, 0
      %p54 = por %p52, %p53
      %s55 = ssub.s32 %s21, %s28
      %p56 = scmp.eq.s32.totalorder %s55, 0
      %s58 = sadd.s32 %s57, 1
      %s59 = scalar_select %p56, %s57, %s58
      %p62 = pneg %p56
      %p63 = scmp.eq.s32.totalorder %s21, 1
      %p64 = por %p62, %p63
      %p65 = scmp.ne.s32.totalorder %s57, %s60
      %p66 = scmp.eq.s32.totalorder %s21, 0
      %p67 = por %p65, %p66
      %p68 = scmp.ne.s32.totalorder %s57, %s60
      %p69 = scmp.eq.s32.totalorder %s26, 1
      %p70 = por %p68, %p69
      %p71 = scmp.ne.s32.totalorder %s60, %s61
      %p72 = scmp.eq.s32.totalorder %s26, 0
      %p73 = por %p71, %p72
      %p74 = scmp.ne.s32.totalorder %s60, %s61
      %p75 = scmp.eq.s32.totalorder %s27, 1
      %p76 = por %p74, %p75
      %p78 = scmp.ne.s32.totalorder %s61, %s77
      %p79 = scmp.eq.s32.totalorder %s27, 0
      %p80 = por %p78, %p79
      %s81 = ssub.s32 %s21, %s28
      %p82 = scmp.eq.s32.totalorder %s81, 0
      %s84 = sadd.s32 %s83, 1
      %s85 = scalar_select %p82, %s83, %s84
      %p88 = pneg %p82
      %p89 = scmp.eq.s32.totalorder %s21, 1
      %p90 = por %p88, %p89
      %p91 = scmp.ne.s32.totalorder %s83, %s86
      %p92 = scmp.eq.s32.totalorder %s21, 0
      %p93 = por %p91, %p92
      %p94 = scmp.ne.s32.totalorder %s83, %s86
      %p95 = scmp.eq.s32.totalorder %s26, 1
      %p96 = por %p94, %p95
      %p97 = scmp.ne.s32.totalorder %s86, %s87
      %p98 = scmp.eq.s32.totalorder %s26, 0
      %p99 = por %p97, %p98
      %p100 = scmp.ne.s32.totalorder %s86, %s87
      %p101 = scmp.eq.s32.totalorder %s27, 1
      %p102 = por %p100, %p101
      %p104 = scmp.ne.s32.totalorder %s87, %s103
      %p105 = scmp.eq.s32.totalorder %s27, 0
      %p106 = por %p104, %p105
      %s108 = sadd.s32 %s107, 1
      %p111 = scmp.eq.s32.totalorder %s21, 1
      %p112 = scmp.ne.s32.totalorder %s107, %s109
      %p113 = scmp.eq.s32.totalorder %s21, 0
      %p114 = por %p112, %p113
      %p115 = scmp.ne.s32.totalorder %s107, %s109
      %p116 = scmp.eq.s32.totalorder %s26, 1
      %p117 = por %p115, %p116
      %p118 = scmp.ne.s32.totalorder %s109, %s110
      %p119 = scmp.eq.s32.totalorder %s26, 0
      %p120 = por %p118, %p119
      %p121 = scmp.ne.s32.totalorder %s109, %s110
      %p122 = scmp.eq.s32.totalorder %s27, 1
      %p123 = por %p121, %p122
      %p125 = scmp.ne.s32.totalorder %s110, %s124
      %p126 = scmp.eq.s32.totalorder %s27, 0
      %p127 = por %p125, %p126
      %s129 = sadd.s32 %s128, 1
      %p132 = scmp.eq.s32.totalorder %s21, 1
      %p133 = scmp.ne.s32.totalorder %s128, %s130
      %p134 = scmp.eq.s32.totalorder %s21, 0
      %p135 = por %p133, %p134
      %p136 = scmp.ne.s32.totalorder %s128, %s130
      %p137 = scmp.eq.s32.totalorder %s26, 1
      %p138 = por %p136, %p137
      %p139 = scmp.ne.s32.totalorder %s130, %s131
      %p140 = scmp.eq.s32.totalorder %s26, 0
      %p141 = por %p139, %p140
      %p142 = scmp.ne.s32.totalorder %s130, %s131
      %p143 = scmp.eq.s32.totalorder %s27, 1
      %p144 = por %p142, %p143
      %p146 = scmp.ne.s32.totalorder %s131, %s145
      %p147 = scmp.eq.s32.totalorder %s27, 0
      %p148 = por %p146, %p147
      %s150 = sadd.s32 %s149, 1
      %p153 = scmp.eq.s32.totalorder %s21, 1
      %p154 = scmp.ne.s32.totalorder %s149, %s151
      %p155 = scmp.eq.s32.totalorder %s21, 0
      %p156 = por %p154, %p155
      %p157 = scmp.ne.s32.totalorder %s149, %s151
      %p158 = scmp.eq.s32.totalorder %s26, 1
      %p159 = por %p157, %p158
      %p160 = scmp.ne.s32.totalorder %s151, %s152
      %p161 = scmp.eq.s32.totalorder %s26, 0
      %p162 = por %p160, %p161
      %p163 = scmp.ne.s32.totalorder %s151, %s152
      %p164 = scmp.eq.s32.totalorder %s27, 1
      %p165 = por %p163, %p164
      %p167 = scmp.ne.s32.totalorder %s152, %s166
      %p168 = scmp.eq.s32.totalorder %s27, 0
      %p169 = por %p167, %p168
      %s171 = sadd.s32 %s170, 1
      %p174 = scmp.eq.s32.totalorder %s21, 1
      %p175 = scmp.ne.s32.totalorder %s170, %s172
      %p176 = scmp.eq.s32.totalorder %s21, 0
      %p177 = por %p175, %p176
      %p178 = scmp.ne.s32.totalorder %s170, %s172
      %p179 = scmp.eq.s32.totalorder %s26, 1
      %p180 = por %p178, %p179
      %p181 = scmp.ne.s32.totalorder %s172, %s173
      %p182 = scmp.eq.s32.totalorder %s26, 0
      %p183 = por %p181, %p182
      %p184 = scmp.ne.s32.totalorder %s172, %s173
      %p185 = scmp.eq.s32.totalorder %s27, 1
      %p186 = por %p184, %p185
      %p188 = scmp.ne.s32.totalorder %s173, %s187
      %p189 = scmp.eq.s32.totalorder %s27, 0
      %p190 = por %p188, %p189
      %s192 = sadd.s32 %s191, 1
      %p195 = scmp.eq.s32.totalorder %s21, 1
      %p196 = scmp.ne.s32.totalorder %s191, %s193
      %p197 = scmp.eq.s32.totalorder %s21, 0
      %p198 = por %p196, %p197
      %p199 = scmp.ne.s32.totalorder %s191, %s193
      %p200 = scmp.eq.s32.totalorder %s26, 1
      %p201 = por %p199, %p200
      %p202 = scmp.ne.s32.totalorder %s193, %s194
      %p203 = scmp.eq.s32.totalorder %s26, 0
      %p204 = por %p202, %p203
      %p205 = scmp.ne.s32.totalorder %s193, %s194
      %p206 = scmp.eq.s32.totalorder %s27, 1
      %p207 = por %p205, %p206
      %p209 = scmp.ne.s32.totalorder %s194, %s208
      %p210 = scmp.eq.s32.totalorder %s27, 0
      %p211 = por %p209, %p210
      %s213 = sadd.s32 %s212, 1
      %p216 = scmp.eq.s32.totalorder %s21, 1
      %p217 = scmp.ne.s32.totalorder %s212, %s214
      %p218 = scmp.eq.s32.totalorder %s21, 0
      %p219 = por %p217, %p218
      %p220 = scmp.ne.s32.totalorder %s212, %s214
      %p221 = scmp.eq.s32.totalorder %s26, 1
      %p222 = por %p220, %p221
      %p223 = scmp.ne.s32.totalorder %s214, %s215
      %p224 = scmp.eq.s32.totalorder %s26, 0
      %p225 = por %p223, %p224
      %p226 = scmp.ne.s32.totalorder %s214, %s215
      %p227 = scmp.eq.s32.totalorder %s27, 1
      %p228 = por %p226, %p227
      %p230 = scmp.ne.s32.totalorder %s215, %s229
      %p231 = scmp.eq.s32.totalorder %s27, 0
      %p232 = por %p230, %p231
      %s234 = sadd.s32 %s233, 1
      %p237 = scmp.eq.s32.totalorder %s21, 1
      %p238 = scmp.ne.s32.totalorder %s233, %s235
      %p239 = scmp.eq.s32.totalorder %s21, 0
      %p240 = por %p238, %p239
      %p241 = scmp.ne.s32.totalorder %s233, %s235
      %p242 = scmp.eq.s32.totalorder %s26, 1
      %p243 = por %p241, %p242
      %p244 = scmp.ne.s32.totalorder %s235, %s236
      %p245 = scmp.eq.s32.totalorder %s26, 0
      %p246 = por %p244, %p245
      %p247 = scmp.ne.s32.totalorder %s235, %s236
      %p248 = scmp.eq.s32.totalorder %s27, 1
      %p249 = por %p247, %p248
      %p251 = scmp.ne.s32.totalorder %s236, %s250
      %p252 = scmp.eq.s32.totalorder %s27, 0
      %p253 = por %p251, %p252
      %s254 = ssub.s32 %s21, %s28
      %p255 = scmp.eq.s32.totalorder %s254, 0
      %s257 = sadd.s32 %s256, 1
      %s258 = scalar_select %p255, %s256, %s257
      %p261 = pneg %p255
      %p262 = scmp.eq.s32.totalorder %s21, 1
      %p263 = por %p261, %p262
      %p264 = scmp.ne.s32.totalorder %s256, %s259
      %p265 = scmp.eq.s32.totalorder %s21, 0
      %p266 = por %p264, %p265
      %p267 = scmp.ne.s32.totalorder %s256, %s259
      %p268 = scmp.eq.s32.totalorder %s26, 1
      %p269 = por %p267, %p268
      %p270 = scmp.ne.s32.totalorder %s259, %s260
      %p271 = scmp.eq.s32.totalorder %s26, 0
      %p272 = por %p270, %p271
      %p273 = scmp.ne.s32.totalorder %s259, %s260
      %p274 = scmp.eq.s32.totalorder %s27, 1
      %p275 = por %p273, %p274
      %p277 = scmp.ne.s32.totalorder %s260, %s276
      %p278 = scmp.eq.s32.totalorder %s27, 0
      %p279 = por %p277, %p278
      %p280 = scmp.le.s32.totalorder 1, %s21
      %p281 = scmp.lt.s32.totalorder %s21, 3
      %p282 = pnand %p280, %p281
      %p283 = pneg %p282
      // Predicated region
      $region9: #{tpu_custom_call.1} parent=5 // pred_check
        _
      $region10: #{tpu_custom_call.1} parent=5 // pred_check_branch
        %285 = sbr.rel (%p282) target = $region12
      $region11: #{tpu_custom_call.1} parent=5 // pred_region
        %s286 = ssub.s32 %s21, 1
        // Predicated region
        $region13: #{tpu_custom_call.1} parent=11 // pred_check
          %p287 = pneg %p120
        $region14: #{tpu_custom_call.1} parent=11 // pred_check_branch
          %289 = sbr.rel (%p287) target = $region16
        $region15: #{tpu_custom_call.1} parent=11 // pred_region
          _
        $region16: #{tpu_custom_call.1} parent=11 // pred_fallthru
          _
        // Predicated region
        $region17: #{tpu_custom_call.1} parent=11 // pred_check
          %p290 = pneg %p141
        $region18: #{tpu_custom_call.1} parent=11 // pred_check_branch
          %292 = sbr.rel (%p290) target = $region20
        $region19: #{tpu_custom_call.1} parent=11 // pred_region
          _
        $region20: #{tpu_custom_call.1} parent=11 // pred_fallthru
          _
        // Predicated region
        $region21: #{tpu_custom_call.1} parent=11 // pred_check
          %p293 = pneg %p162
        $region22: #{tpu_custom_call.1} parent=11 // pred_check_branch
          %295 = sbr.rel (%p293) target = $region24
        $region23: #{tpu_custom_call.1} parent=11 // pred_region
          _
        $region24: #{tpu_custom_call.1} parent=11 // pred_fallthru
          _
        // Predicated region
        $region25: #{tpu_custom_call.1} parent=11 // pred_check
          %p296 = pneg %p183
        $region26: #{tpu_custom_call.1} parent=11 // pred_check_branch
          %298 = sbr.rel (%p296) target = $region28
        $region27: #{tpu_custom_call.1} parent=11 // pred_region
          _
        $region28: #{tpu_custom_call.1} parent=11 // pred_fallthru
          _
        // Predicated region
        $region29: #{tpu_custom_call.1} parent=11 // pred_check
          %p299 = pneg %p204
        $region30: #{tpu_custom_call.1} parent=11 // pred_check_branch
          %301 = sbr.rel (%p299) target = $region32
        $region31: #{tpu_custom_call.1} parent=11 // pred_region
          _
        $region32: #{tpu_custom_call.1} parent=11 // pred_fallthru
          _
        // Predicated region
        $region33: #{tpu_custom_call.1} parent=11 // pred_check
          %p302 = pneg %p225
        $region34: #{tpu_custom_call.1} parent=11 // pred_check_branch
          %304 = sbr.rel (%p302) target = $region36
        $region35: #{tpu_custom_call.1} parent=11 // pred_region
          _
        $region36: #{tpu_custom_call.1} parent=11 // pred_fallthru
          _
        // Predicated region
        $region37: #{tpu_custom_call.1} parent=11 // pred_check
          %p305 = pneg %p246
        $region38: #{tpu_custom_call.1} parent=11 // pred_check_branch
          %307 = sbr.rel (%p305) target = $region40
        $region39: #{tpu_custom_call.1} parent=11 // pred_region
          _
        $region40: #{tpu_custom_call.1} parent=11 // pred_fallthru
          _
      $region12: #{tpu_custom_call.1} parent=5 // pred_fallthru
        _
      %p308 = scmp.lt.s32.totalorder %s21, 2
      // Predicated region
      $region41: #{tpu_custom_call.1} parent=5 // pred_check
        %p309 = pneg %p308
      $region42: #{tpu_custom_call.1} parent=5 // pred_check_branch
        %311 = sbr.rel (%p309) target = $region44
      $region43: #{tpu_custom_call.1} parent=5 // pred_region
        // Predicated region
        $region45: #{tpu_custom_call.1} parent=43 // pred_check
          %p312 = pneg %p41
        $region46: #{tpu_custom_call.1} parent=43 // pred_check_branch
          %314 = sbr.rel (%p312) target = $region48
        $region47: #{tpu_custom_call.1} parent=43 // pred_region
          %s315 = smul.u32 16, %s21
          %p316 = scmp.lt.s32.totalorder %s315, 31
          %s317 = scalar_select %p316, %s315, 31
          %s318 = smul.addr %s317, 4
          %s319 = scalar_lea.vmem %s0, %s318
          %s320 = smul.u32 16, %s21
        $region48: #{tpu_custom_call.1} parent=43 // pred_fallthru
          _
        // Predicated region
        $region49: #{tpu_custom_call.1} parent=43 // pred_check
          %p321 = pneg %p67
        $region50: #{tpu_custom_call.1} parent=43 // pred_check_branch
          %323 = sbr.rel (%p321) target = $region52
        $region51: #{tpu_custom_call.1} parent=43 // pred_region
          %p324 = scmp.lt.s32.totalorder %s21, 1
          %s325 = scalar_select %p324, %s21, 1
          %s326 = smul.addr %s325, 4
          %s327 = scalar_lea.vmem %s1, %s326
        $region52: #{tpu_custom_call.1} parent=43 // pred_fallthru
          _
        // Predicated region
        $region53: #{tpu_custom_call.1} parent=43 // pred_check
          %p328 = pneg %p93
        $region54: #{tpu_custom_call.1} parent=43 // pred_check_branch
          %330 = sbr.rel (%p328) target = $region56
        $region55: #{tpu_custom_call.1} parent=43 // pred_region
          %p331 = scmp.lt.s32.totalorder %s21, 1
          %s332 = scalar_select %p331, %s21, 1
          %s333 = smul.addr %s332, 8
          %s334 = scalar_lea.vmem %s2, %s333
        $region56: #{tpu_custom_call.1} parent=43 // pred_fallthru
          _
      $region44: #{tpu_custom_call.1} parent=5 // pred_fallthru
        _
      %p335 = scmp.le.s32.totalorder 1, %s21
      %p336 = scmp.lt.s32.totalorder %s21, 3
      %p337 = pnand %p335, %p336
      %p338 = pneg %p337
      // Predicated region
      $region57: #{tpu_custom_call.1} parent=5 // pred_check
        _
      $region58: #{tpu_custom_call.1} parent=5 // pred_check_branch
        %340 = sbr.rel (%p337) target = $region60
      $region59: #{tpu_custom_call.1} parent=5 // pred_region
        %s341 = ssub.s32 %s21, 1
        %s342 = smul.u32 16, %s26
        %p343 = scmp.lt.s32.totalorder %s342, 31
        %s344 = scalar_select %p343, %s342, 31
        %s345 = smul.addr %s344, 4
        %s346 = scalar_lea.vmem %s0, %s345
        %p347 = pneg %p47
        %p348 = pneg %p44
        %p349 = scmp.lt.s32.totalorder %s26, 1
        %s350 = scalar_select %p349, %s26, 1
        %s351 = smul.addr %s350, 4
        %s352 = scalar_lea.vmem %s1, %s351
        %p353 = pneg %p73
        %p354 = pneg %p70
        %p355 = scmp.lt.s32.totalorder %s26, 1
        %s356 = scalar_select %p355, %s26, 1
        %s357 = smul.addr %s356, 8
        %s358 = scalar_lea.vmem %s2, %s357
        %p359 = pneg %p99
        %p360 = pneg %p96
        %p361 = pneg %p120
        %p362 = pneg %p117
        %p363 = pneg %p141
        %p364 = pneg %p138
        %p365 = pneg %p162
        %p366 = pneg %p159
        %p367 = pneg %p183
        %p368 = pneg %p180
        %p369 = pneg %p204
        %p370 = pneg %p201
        %p371 = pneg %p225
        %p372 = pneg %p222
        %p373 = pneg %p246
        %p374 = pneg %p243
        %p375 = pneg %p272
        %p376 = pneg %p269
        %s377 = sand.u32 %s259, 1
        %s378 = scalar_lea.sflag [#allocation4], %s377
        %s379 = sand.u32 %s259, 1
        %s380 = smul.addr %s379, 8
        %s381 = scalar_lea.vmem [#allocation3], %s380
        %s382 = smul.u32 16, %s26
        %p383 = scmp.lt.s32.totalorder %s382, 31
        %s384 = scalar_select %p383, %s382, 31
        %s385 = smul.addr %s384, 4
        %s386 = scalar_lea.vmem %s0, %s385
        %s387 = smul.u32 16, %s26
        %p388 = scmp.lt.s32.totalorder %s26, 1
        %s389 = scalar_select %p388, %s26, 1
        %s390 = smul.addr %s389, 4
        %s391 = scalar_lea.vmem %s1, %s390
        %p392 = scmp.lt.s32.totalorder %s26, 1
        %s393 = scalar_select %p392, %s26, 1
        %s394 = smul.addr %s393, 8
        %s395 = scalar_lea.vmem %s2, %s394
        %v397 = vld [vmem:[%s391] sm:$0xf]
        %v398 = vld [vmem:[%s4] sm:$0xf]
        %v399 = vld [vmem:[%s4 + $0x4] sm:$0xf]
        %v400 = vld [vmem:[%s4 + $0x8] sm:$0xf]
        %v401 = vld [vmem:[%s4 + $0xc] sm:$0xf]
        %v402 = vld [vmem:[%s7] sm:$0x1]
        %v404 = vlaneseq
        %v405 = vshrl.u32 %v404, 7
        %v406 = vsub.s32 0, %v405
        %v407 = vrot.slane %v402, %v406
        %v413 = vunpack.c.l.b16 %v398
        %v414 = vunpack.c.l.b16 %v399
        %v415 = vunpack.c.l.b16 %v400
        %v416 = vunpack.c.l.b16 %v401
        %v417 = vpack.c.b16 %v414, %v413
        %v418 = vpack.c.b16 %v416, %v415
        %vm421 = vcmask 261120
        %v423 = vsel %vm421, %v397, 0
        %425 = vmatprep.subr.bf16.mxu0 0
        %426 = vmatpush1.bf16.msra.mxu0 %v417
        %427 = vmatprep.subr.bf16.mxu0 0
        %428 = vmatpush1.bf16.msra.mxu0 %v418
        %429 = vmatprep.subr.bf16.mxu0 0
        %430 = vmatpush1.bf16.msra.mxu0 0
        %431 = vmatprep.subr.bf16.mxu0 0
        %432 = vmatpush1.bf16.msra.mxu0 0
        %433 = vmatprep.subr.bf16.mxu0 0
        %434 = vmatpush1.bf16.msra.mxu0 0
        %435 = vmatprep.subr.bf16.mxu0 0
        %436 = vmatpush1.bf16.msra.mxu0 0
        %437 = vmatprep.subr.bf16.mxu0 0
        %438 = vmatpush1.bf16.msra.mxu0 0
        %439 = vmatprep.subr.bf16.mxu0 0
        %440 = vmatpush1.bf16.msra.mxu0 0
        %441 = vmatprep.subr.bf16.mxu0 0
        %442 = vmatpush1.bf16.msra.mxu0 0
        %443 = vmatprep.subr.bf16.mxu0 0
        %444 = vmatpush1.bf16.msra.mxu0 0
        %445 = vmatprep.subr.bf16.mxu0 0
        %446 = vmatpush1.bf16.msra.mxu0 0
        %447 = vmatprep.subr.bf16.mxu0 0
        %448 = vmatpush1.bf16.msra.mxu0 0
        %449 = vmatprep.subr.bf16.mxu0 0
        %450 = vmatpush1.bf16.msra.mxu0 0
        %451 = vmatprep.subr.bf16.mxu0 0
        %452 = vmatpush1.bf16.msra.mxu0 0
        %453 = vmatprep.subr.bf16.mxu0 0
        %454 = vmatpush1.bf16.msra.mxu0 0
        %455 = vmatprep.subr.bf16.mxu0 0
        %456 = vmatpush1.bf16.msra.mxu0 0
        %457 = vmatprep.mubr.bf16.mxu0 0
        %458 = vmatmul.mubr.bf16.gmra.mrb[0].mxu0 %v423
        %v459 = vpop.f32.mrb[0].mxu0
        %v460 = vadd.f32 %v407, %v459
        %v461 = vpop.f32.mrb[0].mxu0
        %v462 = vpop.f32.mrb[0].mxu0
        %v463 = vpop.f32.mrb[0].mxu0
        %464 = vdwg.mxu0
        %v465 = vld [vmem:[%s386] sm:$0xf]
        %v466 = vld [vmem:[%s386 + $0x4] sm:$0xf]
        %v467 = vld [vmem:[%s386 + $0x8] sm:$0xf]
        %v468 = vld [vmem:[%s386 + $0xc] sm:$0xf]
        %v469 = vld [vmem:[%s386 + $0x10] sm:$0xf]
        %v470 = vld [vmem:[%s386 + $0x14] sm:$0xf]
        %v471 = vld [vmem:[%s386 + $0x18] sm:$0xf]
        %v472 = vld [vmem:[%s386 + $0x1c] sm:$0xf]
        %v473 = vld [vmem:[%s386 + $0x20] sm:$0xf]
        %v474 = vld [vmem:[%s386 + $0x24] sm:$0xf]
        %v475 = vld [vmem:[%s386 + $0x28] sm:$0xf]
        %v476 = vld [vmem:[%s386 + $0x2c] sm:$0xf]
        %v477 = vld [vmem:[%s386 + $0x30] sm:$0xf]
        %v478 = vld [vmem:[%s386 + $0x34] sm:$0xf]
        %v479 = vld [vmem:[%s386 + $0x38] sm:$0xf]
        %v480 = vld [vmem:[%s386 + $0x3c] sm:$0xf]
        %v481 = vld [vmem:[%s3] sm:$0xf]
        %v482 = vld [vmem:[%s3 + $0x4] sm:$0xf]
        %v483 = vld [vmem:[%s3 + $0x8] sm:$0xf]
        %v484 = vld [vmem:[%s3 + $0xc] sm:$0xf]
        %v501 = vunpack.c.l.b16 %v465
        %v502 = vunpack.c.l.b16 %v466
        %v503 = vunpack.c.l.b16 %v467
        %v504 = vunpack.c.l.b16 %v468
        %v505 = vunpack.c.l.b16 %v469
        %v506 = vunpack.c.l.b16 %v470
        %v507 = vunpack.c.l.b16 %v471
        %v508 = vunpack.c.l.b16 %v472
        %v509 = vunpack.c.l.b16 %v473
        %v510 = vunpack.c.l.b16 %v474
        %v511 = vunpack.c.l.b16 %v475
        %v512 = vunpack.c.l.b16 %v476
        %v513 = vunpack.c.l.b16 %v477
        %v514 = vunpack.c.l.b16 %v478
        %v515 = vunpack.c.l.b16 %v479
        %v516 = vunpack.c.l.b16 %v480
        %v517 = vpack.c.b16 %v502, %v501
        %v518 = vpack.c.b16 %v504, %v503
        %v519 = vpack.c.b16 %v506, %v505
        %v520 = vpack.c.b16 %v508, %v507
        %v521 = vpack.c.b16 %v510, %v509
        %v522 = vpack.c.b16 %v512, %v511
        %v523 = vpack.c.b16 %v514, %v513
        %v524 = vpack.c.b16 %v516, %v515
        %v529 = vunpack.c.l.b16 %v481
        %v530 = vunpack.c.l.b16 %v482
        %v531 = vunpack.c.l.b16 %v483
        %v532 = vunpack.c.l.b16 %v484
        %v533 = vpack.c.b16 %v530, %v529
        %v534 = vpack.c.b16 %v532, %v531
        %v538 = vsel %vm421, %v517, 0
        %v541 = vsel %vm421, %v518, 0
        %v544 = vsel %vm421, %v519, 0
        %v547 = vsel %vm421, %v520, 0
        %v550 = vsel %vm421, %v521, 0
        %v553 = vsel %vm421, %v522, 0
        %v556 = vsel %vm421, %v523, 0
        %v559 = vsel %vm421, %v524, 0
        %561 = vmatprep.subr.bf16.mxu0 0
        %562 = vmatpush1.bf16.msra.mxu0 %v533
        %563 = vmatprep.subr.bf16.mxu0 0
        %564 = vmatpush1.bf16.msra.mxu0 %v534
        %565 = vmatprep.subr.bf16.mxu0 0
        %566 = vmatpush1.bf16.msra.mxu0 0
        %567 = vmatprep.subr.bf16.mxu0 0
        %568 = vmatpush1.bf16.msra.mxu0 0
        %569 = vmatprep.subr.bf16.mxu0 0
        %570 = vmatpush1.bf16.msra.mxu0 0
        %571 = vmatprep.subr.bf16.mxu0 0
        %572 = vmatpush1.bf16.msra.mxu0 0
        %573 = vmatprep.subr.bf16.mxu0 0
        %574 = vmatpush1.bf16.msra.mxu0 0
        %575 = vmatprep.subr.bf16.mxu0 0
        %576 = vmatpush1.bf16.msra.mxu0 0
        %577 = vmatprep.subr.bf16.mxu0 0
        %578 = vmatpush1.bf16.msra.mxu0 0
        %579 = vmatprep.subr.bf16.mxu0 0
        %580 = vmatpush1.bf16.msra.mxu0 0
        %581 = vmatprep.subr.bf16.mxu0 0
        %582 = vmatpush1.bf16.msra.mxu0 0
        %583 = vmatprep.subr.bf16.mxu0 0
        %584 = vmatpush1.bf16.msra.mxu0 0
        %585 = vmatprep.subr.bf16.mxu0 0
        %586 = vmatpush1.bf16.msra.mxu0 0
        %587 = vmatprep.subr.bf16.mxu0 0
        %588 = vmatpush1.bf16.msra.mxu0 0
        %589 = vmatprep.subr.bf16.mxu0 0
        %590 = vmatpush1.bf16.msra.mxu0 0
        %591 = vmatprep.subr.bf16.mxu0 0
        %592 = vmatpush1.bf16.msra.mxu0 0
        %593 = vmatprep.mubr.bf16.mxu0 0
        %594 = vmatmul.mubr.bf16.gmra.mrb[0].mxu0 %v538
        %v595 = vpop.f32.mrb[0].mxu0
        %v596 = vadd.f32 0.0, %v595
        %v597 = vpop.f32.mrb[0].mxu0
        %v598 = vpop.f32.mrb[0].mxu0
        %v599 = vadd.f32 0.0, %v598
        %v600 = vpop.f32.mrb[0].mxu0
        %601 = vmatprep.mubr.bf16.mxu0 0
        %602 = vmatmul.mubr.bf16.gmra.mrb[0].mxu0 %v541
        %v603 = vpop.f32.mrb[0].mxu0
        %v604 = vadd.f32 0.0, %v603
        %v605 = vpop.f32.mrb[0].mxu0
        %v606 = vpop.f32.mrb[0].mxu0
        %v607 = vadd.f32 0.0, %v606
        %v608 = vpop.f32.mrb[0].mxu0
        %609 = vmatprep.mubr.bf16.mxu0 0
        %610 = vmatmul.mubr.bf16.gmra.mrb[0].mxu0 %v544
        %v611 = vpop.f32.mrb[0].mxu0
        %v612 = vadd.f32 0.0, %v611
        %v613 = vpop.f32.mrb[0].mxu0
        %v614 = vpop.f32.mrb[0].mxu0
        %v615 = vadd.f32 0.0, %v614
        %v616 = vpop.f32.mrb[0].mxu0
        %617 = vmatprep.mubr.bf16.mxu0 0
        %618 = vmatmul.mubr.bf16.gmra.mrb[0].mxu0 %v547
        %v619 = vpop.f32.mrb[0].mxu0
        %v620 = vadd.f32 0.0, %v619
        %v621 = vpop.f32.mrb[0].mxu0
        %v622 = vpop.f32.mrb[0].mxu0
        %v623 = vadd.f32 0.0, %v622
        %v624 = vpop.f32.mrb[0].mxu0
        %625 = vmatprep.mubr.bf16.mxu0 0
        %626 = vmatmul.mubr.bf16.gmra.mrb[0].mxu0 %v550
        %v627 = vpop.f32.mrb[0].mxu0
        %v628 = vadd.f32 0.0, %v627
        %v629 = vpop.f32.mrb[0].mxu0
        %v630 = vpop.f32.mrb[0].mxu0
        %v631 = vadd.f32 0.0, %v630
        %v632 = vpop.f32.mrb[0].mxu0
        %633 = vmatprep.mubr.bf16.mxu0 0
        %634 = vmatmul.mubr.bf16.gmra.mrb[0].mxu0 %v553
        %v635 = vpop.f32.mrb[0].mxu0
        %v636 = vadd.f32 0.0, %v635
        %v637 = vpop.f32.mrb[0].mxu0
        %v638 = vpop.f32.mrb[0].mxu0
        %v639 = vadd.f32 0.0, %v638
        %v640 = vpop.f32.mrb[0].mxu0
        %641 = vmatprep.mubr.bf16.mxu0 0
        %642 = vmatmul.mubr.bf16.gmra.mrb[0].mxu0 %v556
        %v643 = vpop.f32.mrb[0].mxu0
        %v644 = vadd.f32 0.0, %v643
        %v645 = vpop.f32.mrb[0].mxu0
        %v646 = vpop.f32.mrb[0].mxu0
        %v647 = vadd.f32 0.0, %v646
        %v648 = vpop.f32.mrb[0].mxu0
        %649 = vmatprep.mubr.bf16.mxu0 0
        %650 = vmatmul.mubr.bf16.gmra.mrb[0].mxu0 %v559
        %v651 = vpop.f32.mrb[0].mxu0
        %v652 = vadd.f32 0.0, %v651
        %v653 = vpop.f32.mrb[0].mxu0
        %v654 = vpop.f32.mrb[0].mxu0
        %v655 = vadd.f32 0.0, %v654
        %v656 = vpop.f32.mrb[0].mxu0
        %657 = vdwg.mxu0
        %v659 = vcombine.high %v460, %v460
        %v661 = vunpack.c.l.s4 1966171168
        %v662 = vunpack.c.0.s8 %v661
        %v663 = vlaneseq
        %v664 = vshrl.u32 %v663, 7
        %v665 = vsub.s32 %v662, %v664
        %v666 = vrot.slane %v460, %v665
        %v668 = vunpack.c.l.s4 1966171168
        %v669 = vunpack.c.0.s8 %v668
        %v670 = vlaneseq
        %v671 = vshrl.u32 %v670, 7
        %v672 = vsub.s32 %v669, %v671
        %v673 = vrot.slane %v659, %v672
        %v674 = vcombine.high %v666, %v666
        %v675 = vcombine.high %v673, %v673
        %v677 = vunpack.c.l.s4 1966171168
        %v678 = vunpack.c.0.s8 %v677
        %v679 = vlaneseq
        %v680 = vshrl.u32 %v679, 7
        %v681 = vsub.s32 %v678, %v680
        %v682 = vrot.slane %v666, %v681
        %v684 = vunpack.c.l.s4 1966171168
        %v685 = vunpack.c.0.s8 %v684
        %v686 = vlaneseq
        %v687 = vshrl.u32 %v686, 7
        %v688 = vsub.s32 %v685, %v687
        %v689 = vrot.slane %v673, %v688
        %v691 = vunpack.c.l.s4 1966171168
        %v692 = vunpack.c.0.s8 %v691
        %v693 = vlaneseq
        %v694 = vshrl.u32 %v693, 7
        %v695 = vsub.s32 %v692, %v694
        %v696 = vrot.slane %v674, %v695
        %v698 = vunpack.c.l.s4 1966171168
        %v699 = vunpack.c.0.s8 %v698
        %v700 = vlaneseq
        %v701 = vshrl.u32 %v700, 7
        %v702 = vsub.s32 %v699, %v701
        %v703 = vrot.slane %v675, %v702
        %v704 = vcombine.high %v682, %v682
        %v705 = vcombine.high %v689, %v689
        %v706 = vcombine.high %v696, %v696
        %v707 = vcombine.high %v703, %v703
        %v708 = vlaneseq
        %v709 = vshrl.u32 %v708, 7
        %v710 = vsub.s32 0, %v709
        %v711 = vrot.slane %v682, %v710
        %v712 = vlaneseq
        %v713 = vshrl.u32 %v712, 7
        %v714 = vsub.s32 0, %v713
        %v715 = vrot.slane %v696, %v714
        %v716 = vlaneseq
        %v717 = vshrl.u32 %v716, 7
        %v718 = vsub.s32 0, %v717
        %v719 = vrot.slane %v704, %v718
        %v720 = vlaneseq
        %v721 = vshrl.u32 %v720, 7
        %v722 = vsub.s32 0, %v721
        %v723 = vrot.slane %v706, %v722
        %v724 = vlaneseq
        %v725 = vshrl.u32 %v724, 7
        %v726 = vsub.s32 0, %v725
        %v727 = vrot.slane %v689, %v726
        %v728 = vlaneseq
        %v729 = vshrl.u32 %v728, 7
        %v730 = vsub.s32 0, %v729
        %v731 = vrot.slane %v703, %v730
        %v732 = vlaneseq
        %v733 = vshrl.u32 %v732, 7
        %v734 = vsub.s32 0, %v733
        %v735 = vrot.slane %v705, %v734
        %v736 = vlaneseq
        %v737 = vshrl.u32 %v736, 7
        %v738 = vsub.s32 0, %v737
        %v739 = vrot.slane %v707, %v738
        %v748 = vadd.f32 %v596, %v711
        %v749 = vadd.f32 %v599, %v711
        %v750 = vadd.f32 %v604, %v715
        %v751 = vadd.f32 %v607, %v715
        %v752 = vadd.f32 %v612, %v719
        %v753 = vadd.f32 %v615, %v719
        %v754 = vadd.f32 %v620, %v723
        %v755 = vadd.f32 %v623, %v723
        %v756 = vadd.f32 %v628, %v727
        %v757 = vadd.f32 %v631, %v727
        %v758 = vadd.f32 %v636, %v731
        %v759 = vadd.f32 %v639, %v731
        %v760 = vadd.f32 %v644, %v735
        %v761 = vadd.f32 %v647, %v735
        %v762 = vadd.f32 %v652, %v739
        %v763 = vadd.f32 %v655, %v739
        %vm764 = vcmp.ge.f32.partialorder %v748, 0.0
        %vm765 = vcmp.ge.f32.partialorder %v749, 0.0
        %vm766 = vcmp.ge.f32.partialorder %v750, 0.0
        %vm767 = vcmp.ge.f32.partialorder %v751, 0.0
        %vm768 = vcmp.ge.f32.partialorder %v752, 0.0
        %vm769 = vcmp.ge.f32.partialorder %v753, 0.0
        %vm770 = vcmp.ge.f32.partialorder %v754, 0.0
        %vm771 = vcmp.ge.f32.partialorder %v755, 0.0
        %vm772 = vcmp.ge.f32.partialorder %v756, 0.0
        %vm773 = vcmp.ge.f32.partialorder %v757, 0.0
        %vm774 = vcmp.ge.f32.partialorder %v758, 0.0
        %vm775 = vcmp.ge.f32.partialorder %v759, 0.0
        %vm776 = vcmp.ge.f32.partialorder %v760, 0.0
        %vm777 = vcmp.ge.f32.partialorder %v761, 0.0
        %vm778 = vcmp.ge.f32.partialorder %v762, 0.0
        %vm779 = vcmp.ge.f32.partialorder %v763, 0.0
        %v780 = vmul.f32 %v748, 0.01
        %v781 = vmul.f32 %v749, 0.01
        %v782 = vmul.f32 %v750, 0.01
        %v783 = vmul.f32 %v751, 0.01
        %v784 = vmul.f32 %v752, 0.01
        %v785 = vmul.f32 %v753, 0.01
        %v786 = vmul.f32 %v754, 0.01
        %v787 = vmul.f32 %v755, 0.01
        %v788 = vmul.f32 %v756, 0.01
        %v789 = vmul.f32 %v757, 0.01
        %v790 = vmul.f32 %v758, 0.01
        %v791 = vmul.f32 %v759, 0.01
        %v792 = vmul.f32 %v760, 0.01
        %v793 = vmul.f32 %v761, 0.01
        %v794 = vmul.f32 %v762, 0.01
        %v795 = vmul.f32 %v763, 0.01
        %v796 = vsel %vm764, %v748, %v780
        %v797 = vsel %vm765, %v749, %v781
        %v798 = vsel %vm766, %v750, %v782
        %v799 = vsel %vm767, %v751, %v783
        %v800 = vsel %vm768, %v752, %v784
        %v801 = vsel %vm769, %v753, %v785
        %v802 = vsel %vm770, %v754, %v786
        %v803 = vsel %vm771, %v755, %v787
        %v804 = vsel %vm772, %v756, %v788
        %v805 = vsel %vm773, %v757, %v789
        %v806 = vsel %vm774, %v758, %v790
        %v807 = vsel %vm775, %v759, %v791
        %v808 = vsel %vm776, %v760, %v792
        %v809 = vsel %vm777, %v761, %v793
        %v810 = vsel %vm778, %v762, %v794
        %v811 = vsel %vm779, %v763, %v795
        %v812 = vpack.c.bf16 %v797, %v796
        %v813 = vpack.c.bf16 %v799, %v798
        %v814 = vpack.c.bf16 %v801, %v800
        %v815 = vpack.c.bf16 %v803, %v802
        %v816 = vpack.c.bf16 %v805, %v804
        %v817 = vpack.c.bf16 %v807, %v806
        %v818 = vpack.c.bf16 %v809, %v808
        %v819 = vpack.c.bf16 %v811, %v810
        %v820 = vld [vmem:[%s5] sm:$0xf]
        %v821 = vld [vmem:[%s5 + $0x4] sm:$0xf]
        %v822 = vld [vmem:[%s5 + $0x8] sm:$0xf]
        %v823 = vld [vmem:[%s5 + $0xc] sm:$0xf]
        %v824 = vld [vmem:[%s8] sm:$0x1]
        %v826 = vlaneseq
        %v827 = vshrl.u32 %v826, 7
        %v828 = vsub.s32 0, %v827
        %v829 = vrot.slane %v824, %v828
        %v835 = vunpack.c.l.b16 %v820
        %v836 = vunpack.c.l.b16 %v821
        %v837 = vunpack.c.l.b16 %v822
        %v838 = vunpack.c.l.b16 %v823
        %v839 = vpack.c.b16 %v836, %v835
        %v840 = vpack.c.b16 %v838, %v837
        %v844 = vsel %vm421, %v812, 0
        %v847 = vsel %vm421, %v813, 0
        %v850 = vsel %vm421, %v814, 0
        %v853 = vsel %vm421, %v815, 0
        %v856 = vsel %vm421, %v816, 0
        %v859 = vsel %vm421, %v817, 0
        %v862 = vsel %vm421, %v818, 0
        %v865 = vsel %vm421, %v819, 0
        %867 = vmatprep.subr.bf16.mxu0 0
        %868 = vmatpush1.bf16.msra.mxu0 %v839
        %869 = vmatprep.subr.bf16.mxu0 0
        %870 = vmatpush1.bf16.msra.mxu0 %v840
        %871 = vmatprep.subr.bf16.mxu0 0
        %872 = vmatpush1.bf16.msra.mxu0 0
        %873 = vmatprep.subr.bf16.mxu0 0
        %874 = vmatpush1.bf16.msra.mxu0 0
        %875 = vmatprep.subr.bf16.mxu0 0
        %876 = vmatpush1.bf16.msra.mxu0 0
        %877 = vmatprep.subr.bf16.mxu0 0
        %878 = vmatpush1.bf16.msra.mxu0 0
        %879 = vmatprep.subr.bf16.mxu0 0
        %880 = vmatpush1.bf16.msra.mxu0 0
        %881 = vmatprep.subr.bf16.mxu0 0
        %882 = vmatpush1.bf16.msra.mxu0 0
        %883 = vmatprep.subr.bf16.mxu0 0
        %884 = vmatpush1.bf16.msra.mxu0 0
        %885 = vmatprep.subr.bf16.mxu0 0
        %886 = vmatpush1.bf16.msra.mxu0 0
        %887 = vmatprep.subr.bf16.mxu0 0
        %888 = vmatpush1.bf16.msra.mxu0 0
        %889 = vmatprep.subr.bf16.mxu0 0
        %890 = vmatpush1.bf16.msra.mxu0 0
        %891 = vmatprep.subr.bf16.mxu0 0
        %892 = vmatpush1.bf16.msra.mxu0 0
        %893 = vmatprep.subr.bf16.mxu0 0
        %894 = vmatpush1.bf16.msra.mxu0 0
        %895 = vmatprep.subr.bf16.mxu0 0
        %896 = vmatpush1.bf16.msra.mxu0 0
        %897 = vmatprep.subr.bf16.mxu0 0
        %898 = vmatpush1.bf16.msra.mxu0 0
        %899 = vmatprep.mubr.bf16.mxu0 0
        %900 = vmatmul.mubr.bf16.gmra.mrb[0].mxu0 %v844
        %v901 = vpop.f32.mrb[0].mxu0
        %v902 = vadd.f32 %v829, %v901
        %v903 = vpop.f32.mrb[0].mxu0
        %v904 = vpop.f32.mrb[0].mxu0
        %v905 = vadd.f32 %v829, %v904
        %v906 = vpop.f32.mrb[0].mxu0
        %907 = vmatprep.mubr.bf16.mxu0 0
        %908 = vmatmul.mubr.bf16.gmra.mrb[0].mxu0 %v847
        %v909 = vpop.f32.mrb[0].mxu0
        %v910 = vadd.f32 %v829, %v909
        %v911 = vpop.f32.mrb[0].mxu0
        %v912 = vpop.f32.mrb[0].mxu0
        %v913 = vadd.f32 %v829, %v912
        %v914 = vpop.f32.mrb[0].mxu0
        %915 = vmatprep.mubr.bf16.mxu0 0
        %916 = vmatmul.mubr.bf16.gmra.mrb[0].mxu0 %v850
        %v917 = vpop.f32.mrb[0].mxu0
        %v918 = vadd.f32 %v829, %v917
        %v919 = vpop.f32.mrb[0].mxu0
        %v920 = vpop.f32.mrb[0].mxu0
        %v921 = vadd.f32 %v829, %v920
        %v922 = vpop.f32.mrb[0].mxu0
        %923 = vmatprep.mubr.bf16.mxu0 0
        %924 = vmatmul.mubr.bf16.gmra.mrb[0].mxu0 %v853
        %v925 = vpop.f32.mrb[0].mxu0
        %v926 = vadd.f32 %v829, %v925
        %v927 = vpop.f32.mrb[0].mxu0
        %v928 = vpop.f32.mrb[0].mxu0
        %v929 = vadd.f32 %v829, %v928
        %v930 = vpop.f32.mrb[0].mxu0
        %931 = vmatprep.mubr.bf16.mxu0 0
        %932 = vmatmul.mubr.bf16.gmra.mrb[0].mxu0 %v856
        %v933 = vpop.f32.mrb[0].mxu0
        %v934 = vadd.f32 %v829, %v933
        %v935 = vpop.f32.mrb[0].mxu0
        %v936 = vpop.f32.mrb[0].mxu0
        %v937 = vadd.f32 %v829, %v936
        %v938 = vpop.f32.mrb[0].mxu0
        %939 = vmatprep.mubr.bf16.mxu0 0
        %940 = vmatmul.mubr.bf16.gmra.mrb[0].mxu0 %v859
        %v941 = vpop.f32.mrb[0].mxu0
        %v942 = vadd.f32 %v829, %v941
        %v943 = vpop.f32.mrb[0].mxu0
        %v944 = vpop.f32.mrb[0].mxu0
        %v945 = vadd.f32 %v829, %v944
        %v946 = vpop.f32.mrb[0].mxu0
        %947 = vmatprep.mubr.bf16.mxu0 0
        %948 = vmatmul.mubr.bf16.gmra.mrb[0].mxu0 %v862
        %v949 = vpop.f32.mrb[0].mxu0
        %v950 = vadd.f32 %v829, %v949
        %v951 = vpop.f32.mrb[0].mxu0
        %v952 = vpop.f32.mrb[0].mxu0
        %v953 = vadd.f32 %v829, %v952
        %v954 = vpop.f32.mrb[0].mxu0
        %955 = vmatprep.mubr.bf16.mxu0 0
        %956 = vmatmul.mubr.bf16.gmra.mrb[0].mxu0 %v865
        %v957 = vpop.f32.mrb[0].mxu0
        %v958 = vadd.f32 %v829, %v957
        %v959 = vpop.f32.mrb[0].mxu0
        %v960 = vpop.f32.mrb[0].mxu0
        %v961 = vadd.f32 %v829, %v960
        %v962 = vpop.f32.mrb[0].mxu0
        %963 = vdwg.mxu0
        %vm964 = vcmp.ge.f32.partialorder %v902, 0.0
        %vm965 = vcmp.ge.f32.partialorder %v905, 0.0
        %vm966 = vcmp.ge.f32.partialorder %v910, 0.0
        %vm967 = vcmp.ge.f32.partialorder %v913, 0.0
        %vm968 = vcmp.ge.f32.partialorder %v918, 0.0
        %vm969 = vcmp.ge.f32.partialorder %v921, 0.0
        %vm970 = vcmp.ge.f32.partialorder %v926, 0.0
        %vm971 = vcmp.ge.f32.partialorder %v929, 0.0
        %vm972 = vcmp.ge.f32.partialorder %v934, 0.0
        %vm973 = vcmp.ge.f32.partialorder %v937, 0.0
        %vm974 = vcmp.ge.f32.partialorder %v942, 0.0
        %vm975 = vcmp.ge.f32.partialorder %v945, 0.0
        %vm976 = vcmp.ge.f32.partialorder %v950, 0.0
        %vm977 = vcmp.ge.f32.partialorder %v953, 0.0
        %vm978 = vcmp.ge.f32.partialorder %v958, 0.0
        %vm979 = vcmp.ge.f32.partialorder %v961, 0.0
        %v980 = vmul.f32 %v902, 0.01
        %v981 = vmul.f32 %v905, 0.01
        %v982 = vmul.f32 %v910, 0.01
        %v983 = vmul.f32 %v913, 0.01
        %v984 = vmul.f32 %v918, 0.01
        %v985 = vmul.f32 %v921, 0.01
        %v986 = vmul.f32 %v926, 0.01
        %v987 = vmul.f32 %v929, 0.01
        %v988 = vmul.f32 %v934, 0.01
        %v989 = vmul.f32 %v937, 0.01
        %v990 = vmul.f32 %v942, 0.01
        %v991 = vmul.f32 %v945, 0.01
        %v992 = vmul.f32 %v950, 0.01
        %v993 = vmul.f32 %v953, 0.01
        %v994 = vmul.f32 %v958, 0.01
        %v995 = vmul.f32 %v961, 0.01
        %v996 = vsel %vm964, %v902, %v980
        %v997 = vsel %vm965, %v905, %v981
        %v998 = vsel %vm966, %v910, %v982
        %v999 = vsel %vm967, %v913, %v983
        %v1000 = vsel %vm968, %v918, %v984
        %v1001 = vsel %vm969, %v921, %v985
        %v1002 = vsel %vm970, %v926, %v986
        %v1003 = vsel %vm971, %v929, %v987
        %v1004 = vsel %vm972, %v934, %v988
        %v1005 = vsel %vm973, %v937, %v989
        %v1006 = vsel %vm974, %v942, %v990
        %v1007 = vsel %vm975, %v945, %v991
        %v1008 = vsel %vm976, %v950, %v992
        %v1009 = vsel %vm977, %v953, %v993
        %v1010 = vsel %vm978, %v958, %v994
        %v1011 = vsel %vm979, %v961, %v995
        %v1012 = vld [vmem:[%s6] sm:$0x1]
        %v1014 = vlaneseq
        %v1015 = vshrl.u32 %v1014, 7
        %v1016 = vsub.s32 0, %v1015
        %v1017 = vrot.slane %v1012, %v1016
        %v1019 = vmul.f32 %v996, %v1017
        %v1020 = vmul.f32 %v997, %v1017
        %v1021 = vmul.f32 %v998, %v1017
        %v1022 = vmul.f32 %v999, %v1017
        %v1023 = vmul.f32 %v1000, %v1017
        %v1024 = vmul.f32 %v1001, %v1017
        %v1025 = vmul.f32 %v1002, %v1017
        %v1026 = vmul.f32 %v1003, %v1017
        %v1027 = vmul.f32 %v1004, %v1017
        %v1028 = vmul.f32 %v1005, %v1017
        %v1029 = vmul.f32 %v1006, %v1017
        %v1030 = vmul.f32 %v1007, %v1017
        %v1031 = vmul.f32 %v1008, %v1017
        %v1032 = vmul.f32 %v1009, %v1017
        %v1033 = vmul.f32 %v1010, %v1017
        %v1034 = vmul.f32 %v1011, %v1017
        %v1035 = vsel %vm421, %v1019, 0.0
        %1036 = vadd.xlane.f32.xlu0 %v1035
        %v1037 = vpop.xlane.xlu0 %1036
        %v1038 = vsel %vm421, %v1020, 0.0
        %1039 = vadd.xlane.f32.xlu0 %v1038
        %v1040 = vpop.xlane.xlu0 %1039
        %v1041 = vsel %vm421, %v1021, 0.0
        %1042 = vadd.xlane.f32.xlu0 %v1041
        %v1043 = vpop.xlane.xlu0 %1042
        %v1044 = vsel %vm421, %v1022, 0.0
        %1045 = vadd.xlane.f32.xlu0 %v1044
        %v1046 = vpop.xlane.xlu0 %1045
        %v1047 = vsel %vm421, %v1023, 0.0
        %1048 = vadd.xlane.f32.xlu0 %v1047
        %v1049 = vpop.xlane.xlu0 %1048
        %v1050 = vsel %vm421, %v1024, 0.0
        %1051 = vadd.xlane.f32.xlu0 %v1050
        %v1052 = vpop.xlane.xlu0 %1051
        %v1053 = vsel %vm421, %v1025, 0.0
        %1054 = vadd.xlane.f32.xlu0 %v1053
        %v1055 = vpop.xlane.xlu0 %1054
        %v1056 = vsel %vm421, %v1026, 0.0
        %1057 = vadd.xlane.f32.xlu0 %v1056
        %v1058 = vpop.xlane.xlu0 %1057
        %v1059 = vsel %vm421, %v1027, 0.0
        %1060 = vadd.xlane.f32.xlu0 %v1059
        %v1061 = vpop.xlane.xlu0 %1060
        %v1062 = vsel %vm421, %v1028, 0.0
        %1063 = vadd.xlane.f32.xlu0 %v1062
        %v1064 = vpop.xlane.xlu0 %1063
        %v1065 = vsel %vm421, %v1029, 0.0
        %1066 = vadd.xlane.f32.xlu0 %v1065
        %v1067 = vpop.xlane.xlu0 %1066
        %v1068 = vsel %vm421, %v1030, 0.0
        %1069 = vadd.xlane.f32.xlu0 %v1068
        %v1070 = vpop.xlane.xlu0 %1069
        %v1071 = vsel %vm421, %v1031, 0.0
        %1072 = vadd.xlane.f32.xlu0 %v1071
        %v1073 = vpop.xlane.xlu0 %1072
        %v1074 = vsel %vm421, %v1032, 0.0
        %1075 = vadd.xlane.f32.xlu0 %v1074
        %v1076 = vpop.xlane.xlu0 %1075
        %v1077 = vsel %vm421, %v1033, 0.0
        %1078 = vadd.xlane.f32.xlu0 %v1077
        %v1079 = vpop.xlane.xlu0 %1078
        %v1080 = vsel %vm421, %v1034, 0.0
        %1081 = vadd.xlane.f32.xlu0 %v1080
        %v1082 = vpop.xlane.xlu0 %1081
        %v1083 = vld [vmem:[#allocation2] sm:$0x1]
        %v1085 = vlaneseq
        %v1086 = vshrl.u32 %v1085, 7
        %v1087 = vsub.s32 0, %v1086
        %v1088 = vrot.slane %v1083, %v1087
        %1089 = vset.pattern.permute.xlu0 0
        %1090 = vperm.xlu0 %1089, %v1088
        %v1091 = vpop.permute.xlu0 %1090
        %v1093 = vadd.f32 %v1037, %v1091
        %v1094 = vadd.f32 %v1040, %v1091
        %v1095 = vadd.f32 %v1043, %v1091
        %v1096 = vadd.f32 %v1046, %v1091
        %v1097 = vadd.f32 %v1049, %v1091
        %v1098 = vadd.f32 %v1052, %v1091
        %v1099 = vadd.f32 %v1055, %v1091
        %v1100 = vadd.f32 %v1058, %v1091
        %v1101 = vadd.f32 %v1061, %v1091
        %v1102 = vadd.f32 %v1064, %v1091
        %v1103 = vadd.f32 %v1067, %v1091
        %v1104 = vadd.f32 %v1070, %v1091
        %v1105 = vadd.f32 %v1073, %v1091
        %v1106 = vadd.f32 %v1076, %v1091
        %v1107 = vadd.f32 %v1079, %v1091
        %v1108 = vadd.f32 %v1082, %v1091
        %v1109 = vlaneseq
        %v1110 = vand.u32 %v1109, 127
        %v1111 = vld [vmem:[%s395] sm:$0xff]
        %1112 = vset.pattern.permute.xlu0 0
        %1113 = vperm.xlu0 %1112, %v1111
        %v1114 = vpop.permute.xlu0 %1113
        %vm1115 = vcmp.lt.s32.totalorder %v1110, %v1114
        %v1132 = vlaneseq
        %v1133 = vshrl.u32 %v1132, 7
        %v1134 = vsub.s32 %v1110, %v1133
        %v1135 = vrot.slane %v1093, %v1134
        %v1136 = vadd.s32 %v1110, 4294967288
        %v1137 = vlaneseq
        %v1138 = vshrl.u32 %v1137, 7
        %v1139 = vsub.s32 %v1136, %v1138
        %v1140 = vrot.slane %v1094, %v1139
        %vm1141 = vcmask 130112
        %v1142 = vsel %vm1141, %v1140, %v1135
        %v1143 = vlaneseq
        %v1144 = vshrl.u32 %v1143, 7
        %v1145 = vsub.s32 %v1110, %v1144
        %v1146 = vrot.slane %v1095, %v1145
        %v1147 = vlaneseq
        %v1148 = vshrl.u32 %v1147, 7
        %v1149 = vsub.s32 %v1136, %v1148
        %v1150 = vrot.slane %v1096, %v1149
        %v1151 = vsel %vm1141, %v1150, %v1146
        %v1152 = vlaneseq
        %v1153 = vshrl.u32 %v1152, 7
        %v1154 = vsub.s32 %v1110, %v1153
        %v1155 = vrot.slane %v1097, %v1154
        %v1156 = vlaneseq
        %v1157 = vshrl.u32 %v1156, 7
        %v1158 = vsub.s32 %v1136, %v1157
        %v1159 = vrot.slane %v1098, %v1158
        %v1160 = vsel %vm1141, %v1159, %v1155
        %v1161 = vlaneseq
        %v1162 = vshrl.u32 %v1161, 7
        %v1163 = vsub.s32 %v1110, %v1162
        %v1164 = vrot.slane %v1099, %v1163
        %v1165 = vlaneseq
        %v1166 = vshrl.u32 %v1165, 7
        %v1167 = vsub.s32 %v1136, %v1166
        %v1168 = vrot.slane %v1100, %v1167
        %v1169 = vsel %vm1141, %v1168, %v1164
        %v1170 = vlaneseq
        %v1171 = vshrl.u32 %v1170, 7
        %v1172 = vsub.s32 %v1110, %v1171
        %v1173 = vrot.slane %v1101, %v1172
        %v1174 = vlaneseq
        %v1175 = vshrl.u32 %v1174, 7
        %v1176 = vsub.s32 %v1136, %v1175
        %v1177 = vrot.slane %v1102, %v1176
        %v1178 = vsel %vm1141, %v1177, %v1173
        %v1179 = vlaneseq
        %v1180 = vshrl.u32 %v1179, 7
        %v1181 = vsub.s32 %v1110, %v1180
        %v1182 = vrot.slane %v1103, %v1181
        %v1183 = vlaneseq
        %v1184 = vshrl.u32 %v1183, 7
        %v1185 = vsub.s32 %v1136, %v1184
        %v1186 = vrot.slane %v1104, %v1185
        %v1187 = vsel %vm1141, %v1186, %v1182
        %v1188 = vlaneseq
        %v1189 = vshrl.u32 %v1188, 7
        %v1190 = vsub.s32 %v1110, %v1189
        %v1191 = vrot.slane %v1105, %v1190
        %v1192 = vlaneseq
        %v1193 = vshrl.u32 %v1192, 7
        %v1194 = vsub.s32 %v1136, %v1193
        %v1195 = vrot.slane %v1106, %v1194
        %v1196 = vsel %vm1141, %v1195, %v1191
        %v1197 = vlaneseq
        %v1198 = vshrl.u32 %v1197, 7
        %v1199 = vsub.s32 %v1110, %v1198
        %v1200 = vrot.slane %v1107, %v1199
        %v1201 = vlaneseq
        %v1202 = vshrl.u32 %v1201, 7
        %v1203 = vsub.s32 %v1136, %v1202
        %v1204 = vrot.slane %v1108, %v1203
        %v1205 = vsel %vm1141, %v1204, %v1200
        %vm1206 = vcmask 1041409
        %v1207 = vsel %vm1206, %v1151, %v1142
        %vm1208 = vcmask 1042434
        %v1209 = vsel %vm1208, %v1160, %v1207
        %vm1210 = vcmask 1043459
        %v1211 = vsel %vm1210, %v1169, %v1209
        %vm1212 = vcmask 1044484
        %v1213 = vsel %vm1212, %v1178, %v1211
        %vm1214 = vcmask 1045509
        %v1215 = vsel %vm1214, %v1187, %v1213
        %vm1216 = vcmask 1046534
        %v1217 = vsel %vm1216, %v1196, %v1215
        %vm1218 = vcmask 1047559
        %v1219 = vsel %vm1218, %v1205, %v1217
        %v1221 = vsel %vm1115, %v1219, -1e+30
        %vm1222 = vcmask 130048
        %v1223 = vsel %vm1222, %v1221, -inf
        %1224 = vmax.xlane.f32.xlu0 %v1223
        %v1225 = vpop.xlane.xlu0 %1224
        %v1226 = vsub.f32 %v1221, %v1225
        %v1227 = vmul.f32 %v1226, 1.442695
        %v1228 = vpow.pop %v1227
        %v1229 = vsel %vm1115, %v1228, 0.0
        %v1230 = vsel %vm1222, %v1229, 0.0
        %1231 = vadd.xlane.f32.xlu0 %v1230
        %v1232 = vpop.xlane.xlu0 %1231
        %vm1233 = vcmp.gt.f32.partialorder %v1232, 0.0
        %v1234 = vsel %vm1233, %v1232, 1.0
        %v1235 = vrcp.pop %v1234
        %v1236 = vmul.f32 %v1229, %v1235
        %1237 = vst.msk [vmem:[%s381] sm:$0xff] %vm1222, %v1236
        %s1238 = sand.u32 %s259, 1
        %s1239 = scalar_lea.sflag [#allocation4], %s1238
        %s1240 = sand.u32 %s259, 1
        %s1241 = smul.addr %s1240, 8
        %s1242 = scalar_lea.vmem [#allocation3], %s1241
        // Predicated region
        $region61: #{tpu_custom_call.1} parent=59 // pred_check
          %p1243 = pneg %p269
        $region62: #{tpu_custom_call.1} parent=59 // pred_check_branch
          %1245 = sbr.rel (%p1243) target = $region64
        $region63: #{tpu_custom_call.1} parent=59 // pred_region
          %s1247 = ssub.s32 128, 128
          %1248 = vsyncadd %s1239, %s1247
          %s1249 = smul.addr %s26, 128
          %s1250 = scalar_lea.hbm %s10, %s1249
          %s1252 = sshll.u32 %s1242, 4
          %s1253 = int_to_ptr.vmem [resolvable:$true] %s1252
          %1255 = dma.vmem_to_hbm [thread:$0]  %s1253, 128, %s1250, %s1239
        $region64: #{tpu_custom_call.1} parent=59 // pred_fallthru
          _
      $region60: #{tpu_custom_call.1} parent=5 // pred_fallthru
        _
      %p1256 = scmp.le.s32.totalorder 2, %s21
      // Predicated region
      $region65: #{tpu_custom_call.1} parent=5 // pred_check
        %p1257 = pneg %p1256
      $region66: #{tpu_custom_call.1} parent=5 // pred_check_branch
        %1259 = sbr.rel (%p1257) target = $region68
      $region67: #{tpu_custom_call.1} parent=5 // pred_region
        %s1260 = ssub.s32 %s21, 2
        // Predicated region
        $region69: #{tpu_custom_call.1} parent=67 // pred_check
          %p1261 = pneg %p275
        $region70: #{tpu_custom_call.1} parent=67 // pred_check_branch
          %1263 = sbr.rel (%p1261) target = $region72
        $region71: #{tpu_custom_call.1} parent=67 // pred_region
          %s1264 = sand.u32 %s260, 1
          %s1265 = scalar_lea.sflag [#allocation4], %s1264
          %s1266 = sand.u32 %s260, 1
          %s1267 = smul.addr %s1266, 8
          %s1268 = scalar_lea.vmem [#allocation3], %s1267
          %1269 = dma.done %s1265, 128
        $region72: #{tpu_custom_call.1} parent=67 // pred_fallthru
          _
      $region68: #{tpu_custom_call.1} parent=5 // pred_fallthru
        _
    $region6: #{tpu_custom_call.1} parent=1 // loop_footer
      %s25 = sadd.s32 1, %s21
    $region7: #{tpu_custom_call.1} parent=1 // loop_footer_branch
      %20 = sbr.rel target = $region3
    $region8: #{tpu_custom_call.1} parent=1 // loop_exit
      _
    %1270 = vsyncpa [#allocation4], 1
    %s1271 = scalar_lea.sflag [#allocation4], 1
    %1272 = vsyncpa %s1271, 1

</llo_original>
